<compile_context>
chip_gen: v7x
topology: tpu7x:2x2x1
jax: 0.10.0
libtpu: 0.0.40
codegen_flags: <defaults>
</compile_context>

<pallas_src>
import functools

import jax
import jax.numpy as jnp
from jax import lax
from jax.experimental import pallas as pl
from jax.experimental.pallas import tpu as pltpu

BN_EPS = 1e-5
LEAKY_SLOPE = 0.01  # nn.LeakyReLU default
LANE = 128
SUB = 16            # bf16 packs 16 rows/vreg: keep slab row offsets multiples of 16


def _round_up(x, m):
    return -(-x // m) * m


def _leaky_relu(x):
    return jnp.where(x > 0, x, LEAKY_SLOPE * x)


def _l2norm(x):
    # text2pose L2Norm: x / x.norm(dim=-1, keepdim=True).  rsqrt -> EUP slot (no divide);
    # the clamp only protects all-zero padded rows (real rows have ||x||^2 >> 1e-12).
    ss = jnp.sum(x * x, axis=-1, keepdims=True)
    return x * lax.rsqrt(jnp.maximum(ss, 1e-12))


# ---------------------------------------------------------------------------
# Fused kernel: shared-weight pose-pair encoding + pose_mlp + text projection.
# ---------------------------------------------------------------------------
def _pair_text_kernel(pa_ref, pb_ref, pooled_ref,            # batched bf16 activations
                      w_ref, bias_ref,                        # resident packed params
                      pose_out_ref, text_out_ref,
                      *, lay):
    f32 = jnp.float32
    wdt = w_ref.dtype  # bfloat16

    def W(name):                                   # static row/lane slice of weight slab
        r, n, c = lay[name]
        return w_ref[r:r + n, :c]

    def B(row, c):                                 # one bias row (broadcast over batch)
        return bias_ref[row:row + 1, :c]

    w1, w234 = W('w1'), W('w234')
    pm1a, pm1b, pm2, pm3, txtw = W('pm1a'), W('pm1b'), W('pm2'), W('pm3'), W('txt')
    h_pad = lay['w1'][2]
    l_pad = lay['w234'][2]
    l2_pad = lay['pm1a'][2]

    # Folded PoseEncoder: (BN1+Linear1+BN2) -> LeakyReLU -> (Linear2.Linear3.Linear4).
    def encode(x):
        h = _leaky_relu(jnp.dot(x, w1, preferred_element_type=f32) + B(0, h_pad))
        return jnp.dot(h.astype(wdt), w234, preferred_element_type=f32) + B(1, l_pad)

    ea = encode(pa_ref[...])
    eb = encode(pb_ref[...])

    # pose_mlp: ConCat + Linear(2L, 2L) expressed as a split matmul (identical math).
    y = (jnp.dot(ea.astype(wdt), pm1a, preferred_element_type=f32)
         + jnp.dot(eb.astype(wdt), pm1b, preferred_element_type=f32)
         + B(2, l2_pad))
    y = _leaky_relu(y)
    y = _leaky_relu(jnp.dot(y.astype(wdt), pm2, preferred_element_type=f32) + B(3, l_pad))
    y = _leaky_relu(jnp.dot(y.astype(wdt), pm3, preferred_element_type=f32) + B(4, l_pad))
    pose_out_ref[...] = _l2norm(y)

    # Text head: projection of the wrapper-pooled caption embedding + L2Norm.
    t = jnp.dot(pooled_ref[...], txtw, preferred_element_type=f32) + B(5, l_pad)
    text_out_ref[...] = _l2norm(t)


# ---------------------------------------------------------------------------
# Offline parameter folding / packing (zero runtime cost)
# ---------------------------------------------------------------------------
def fold_params(p):
    input_dim = p['w1'].shape[0]
    num_neurons = p['w1'].shape[1]
    latent_d = p['w4'].shape[1]
    d_model = p['tok_emb'].shape[1]

    in_pad = _round_up(input_dim, SUB)
    dm_pad = _round_up(d_model, SUB)
    h_pad = _round_up(num_neurons, LANE)
    l_pad = _round_up(latent_d, LANE)
    l2_pad = _round_up(2 * latent_d, LANE)
    slab_w = max(h_pad, l_pad, l2_pad)

    # Fold eval-mode BN1 (pre) and BN2 (post) into Linear1.
    s1 = p['bn1_g'] / jnp.sqrt(p['bn1_v'] + BN_EPS)     # (1, in)
    s2 = p['bn2_g'] / jnp.sqrt(p['bn2_v'] + BN_EPS)     # (1, nn)
    w1 = p['w1'] * s1.reshape(-1, 1)
    b1 = (p['bn1_b'] - p['bn1_m'] * s1) @ p['w1'] + p['b1']
    w1 = w1 * s2
    b1 = (b1 - p['bn2_m']) * s2 + p['bn2_b']

    # Collapse the activation-free Linear chain w2 -> w3 -> w4.
    w234 = p['w2'] @ p['w3'] @ p['w4']
    b234 = p['b2'] @ p['w3'] @ p['w4'] + p['b3'] @ p['w4'] + p['b4']

    # Zero padding of rows/columns is inert: zero input features x zero weight rows,
    # zero output columns stay zero through bias(0)+LeakyReLU and do not change L2Norm.
    def pad2(w, rows, cols):
        return jnp.pad(w, ((0, rows - w.shape[0]), (0, cols - w.shape[1])))

    pieces = [
        ('w1',   pad2(w1, in_pad, slab_w),                   h_pad),
        ('w234', pad2(w234, h_pad, slab_w),                  l_pad),
        ('pm1a', pad2(p['pm_w1'][:latent_d], l_pad, slab_w), l2_pad),
        ('pm1b', pad2(p['pm_w1'][latent_d:], l_pad, slab_w), l2_pad),
        ('pm2',  pad2(p['pm_w2'], l2_pad, slab_w),           l_pad),
        ('pm3',  pad2(p['pm_w3'], l_pad, slab_w),            l_pad),
        ('txt',  pad2(p['txt_w'], dm_pad, slab_w),           l_pad),
    ]
    lay, off = {}, 0
    for name, mat, cols in pieces:
        lay[name] = (off, mat.shape[0], cols)   # (row offset, rows, used lane width)
        off += mat.shape[0]
    w_slab = jnp.concatenate([m for _, m, _ in pieces], axis=0).astype(jnp.bfloat16)

    def brow(v):
        v = v.reshape(-1)
        return jnp.pad(v, (0, slab_w - v.shape[0]))

    bias_slab = jnp.stack([
        brow(b1), brow(b234), brow(p['pm_b1']), brow(p['pm_b2']),
        brow(p['pm_b3']), brow(p['txt_b']),
        jnp.zeros((slab_w,), jnp.float32), jnp.zeros((slab_w,), jnp.float32),
    ]).astype(jnp.float32)                                    # (8, slab_w) f32

    return dict(
        w_slab=w_slab, bias=bias_slab, tok_emb=p['tok_emb'], layout=lay,
        dims=dict(input_dim=input_dim, num_neurons=num_neurons, latent_d=latent_d,
                  d_model=d_model, in_pad=in_pad, dm_pad=dm_pad,
                  h_pad=h_pad, l_pad=l_pad, l2_pad=l2_pad),
    )


# ---------------------------------------------------------------------------
# Python wrapper (glue: flatten, gather, pooling, padding, pallas_call plumbing)
# ---------------------------------------------------------------------------
def _choose_tile_b(batch):
    b8 = _round_up(max(batch, 8), 8)
    if b8 <= 16:
        return b8                                   # tiny batch: one tile
    # >= 2 grid steps so both v7x TensorCores get work via the "parallel" axis; tiles up
    # to 1024 rows keep per-step overhead amortized while VMEM stays a few MiB.
    return min(1024, _round_up(-(-b8 // 2), 8))


def pair_text_forward(fp, poses_A, captions, caption_lengths, poses_B):
    """PairText.forward: returns (embed_AB, text_embs)."""
    dims, lay = fp['dims'], fp['layout']
    latent_d, l_pad = dims['latent_d'], dims['l_pad']
    in_pad, dm_pad, d_model = dims['in_pad'], dims['dm_pad'], dims['d_model']
    h_pad, l2_pad = dims['h_pad'], dims['l2_pad']

    batch = poses_A.shape[0]
    seq_t = captions.shape[1]

    def prep_pose(x):   # BatchFlatten + zero-pad features to 16-aligned width + bf16
        x = x.reshape(batch, -1).astype(jnp.float32)
        return jnp.pad(x, ((0, 0), (0, in_pad - x.shape[1]))).astype(jnp.bfloat16)

    pa = prep_pose(poses_A)
    pb = prep_pose(poses_B)

    # TODO(synk): the pretrained DistilBERT transformer stack + HF tokenizer of
    # TransformerTextEncoder have no in-script Pallas equivalent; approximated with a
    # token-embedding lookup + masked mean pooling (done here, fused by XLA into the
    # gather) followed by Linear + L2Norm inside the kernel.
    emb = fp['tok_emb'][captions].astype(jnp.float32)                 # (B, T, d_model)
    lens = jnp.clip(caption_lengths, 1, seq_t).astype(jnp.float32)
    mask = (jnp.arange(seq_t)[None, :] < caption_lengths[:, None]).astype(jnp.float32)
    pooled = jnp.einsum('btd,bt->bd', emb, mask) / lens[:, None]      # (B, d_model)
    pooled = jnp.pad(pooled, ((0, 0), (0, dm_pad - d_model))).astype(jnp.bfloat16)

    # Batch tiling / padding to a multiple of the tile size.
    tile_b = _choose_tile_b(batch)
    b_pad = _round_up(batch, tile_b)
    pad = b_pad - batch
    if pad:
        pa = jnp.pad(pa, ((0, pad), (0, 0)))
        pb = jnp.pad(pb, ((0, pad), (0, 0)))
        pooled = jnp.pad(pooled, ((0, pad), (0, 0)))

    grid = (b_pad // tile_b,)
    kernel = functools.partial(_pair_text_kernel, lay=lay)

    def batched(feat):
        return pl.BlockSpec((tile_b, feat), lambda i: (i, 0))

    def resident(arr):
        return pl.BlockSpec(arr.shape, lambda i: (0, 0))

    flops = 2 * b_pad * (2 * (in_pad * h_pad + h_pad * l_pad)     # two pose encoders
                         + 2 * l_pad * l2_pad + l2_pad * l_pad    # pm1 (split) + pm2
                         + l_pad * l_pad + dm_pad * l_pad)        # pm3 + text projection
    bytes_accessed = ((pa.size + pb.size + pooled.size) * 2      # bf16 activations
                      + fp['w_slab'].size * 2 + fp['bias'].size * 4
                      + 2 * b_pad * l_pad * 4)                    # f32 outputs

    pose_out, text_out = pl.pallas_call(
        kernel,
        out_shape=(jax.ShapeDtypeStruct((b_pad, l_pad), jnp.float32),
                   jax.ShapeDtypeStruct((b_pad, l_pad), jnp.float32)),
        grid=grid,
        in_specs=[batched(in_pad), batched(in_pad), batched(dm_pad),
                  resident(fp['w_slab']), resident(fp['bias'])],
        out_specs=(pl.BlockSpec((tile_b, l_pad), lambda i: (i, 0)),
                   pl.BlockSpec((tile_b, l_pad), lambda i: (i, 0))),
        compiler_params=pltpu.CompilerParams(dimension_semantics=("parallel",)),
        cost_estimate=pl.CostEstimate(flops=int(flops),
                                      transcendentals=int(2 * b_pad),
                                      bytes_accessed=int(bytes_accessed)),
    )(pa, pb, pooled, fp['w_slab'], fp['bias'])

    return pose_out[:batch, :latent_d], text_out[:batch, :latent_d]


# ---------------------------------------------------------------------------
# Deterministic parameter initialization (synthetic, shapes from __init__)
# ---------------------------------------------------------------------------
def init_params(key, num_body_joints=22, num_neurons=64, num_neurons_mini=32,
                latentD=32, vocab_size=100, d_model=32):
    input_dim = num_body_joints * 3
    ks = jax.random.split(key, 24)

    def lin(k, din, dout):
        kw, kb = jax.random.split(k)
        w = jax.random.normal(kw, (din, dout), jnp.float32) / jnp.sqrt(float(din))
        b = 0.01 * jax.random.normal(kb, (1, dout), jnp.float32)
        return w, b

    def bn(k, d):
        k1, k2, k3, k4 = jax.random.split(k, 4)
        return dict(
            g=1.0 + 0.1 * jax.random.normal(k1, (1, d), jnp.float32),
            b=0.1 * jax.random.normal(k2, (1, d), jnp.float32),
            m=0.1 * jax.random.normal(k3, (1, d), jnp.float32),
            v=1.0 + 0.1 * jnp.abs(jax.random.normal(k4, (1, d), jnp.float32)),
        )

    p = {}
    bn1 = bn(ks[0], input_dim)
    p['bn1_g'], p['bn1_b'], p['bn1_m'], p['bn1_v'] = bn1['g'], bn1['b'], bn1['m'], bn1['v']
    p['w1'], p['b1'] = lin(ks[1], input_dim, num_neurons)
    bn2 = bn(ks[2], num_neurons)
    p['bn2_g'], p['bn2_b'], p['bn2_m'], p['bn2_v'] = bn2['g'], bn2['b'], bn2['m'], bn2['v']
    p['w2'], p['b2'] = lin(ks[3], num_neurons, num_neurons)
    p['w3'], p['b3'] = lin(ks[4], num_neurons, num_neurons_mini)
    p['w4'], p['b4'] = lin(ks[5], num_neurons_mini, latentD)
    # pose_mlp
    p['pm_w1'], p['pm_b1'] = lin(ks[6], 2 * latentD, 2 * latentD)
    p['pm_w2'], p['pm_b2'] = lin(ks[7], 2 * latentD, latentD)
    p['pm_w3'], p['pm_b3'] = lin(ks[8], latentD, latentD)
    # simplified text encoder
    p['tok_emb'] = 0.1 * jax.random.normal(ks[9], (vocab_size, d_model), jnp.float32)
    p['txt_w'], p['txt_b'] = lin(ks[10], d_model, latentD)
    # loss_weight parameter exists in the module but is unused in forward()
    p['loss_weight'] = jnp.array([10.0], jnp.float32)
    return p


# ---------------------------------------------------------------------------
# Pure-JAX reference (unfolded f32: BN + separate Linears) for a sanity check
# ---------------------------------------------------------------------------
def reference_forward(p, poses_A, captions, caption_lengths, poses_B):
    def bn(x, g, b, m, v):
        return (x - m) * (g / jnp.sqrt(v + BN_EPS)) + b

    def enc(x):
        x = bn(x, p['bn1_g'], p['bn1_b'], p['bn1_m'], p['bn1_v'])
        x = x @ p['w1'] + p['b1']
        x = bn(x, p['bn2_g'], p['bn2_b'], p['bn2_m'], p['bn2_v'])
        x = _leaky_relu(x)
        x = x @ p['w2'] + p['b2']
        x = x @ p['w3'] + p['b3']
        x = x @ p['w4'] + p['b4']
        return x

    batch = poses_A.shape[0]
    seq_t = captions.shape[1]
    ea = enc(poses_A.reshape(batch, -1))
    eb = enc(poses_B.reshape(batch, -1))
    x = jnp.concatenate([ea, eb], axis=1) @ p['pm_w1'] + p['pm_b1']
    x = _leaky_relu(x)
    x = _leaky_relu(x @ p['pm_w2'] + p['pm_b2'])
    x = _leaky_relu(x @ p['pm_w3'] + p['pm_b3'])
    embed_AB = x / jnp.linalg.norm(x, axis=-1, keepdims=True)

    emb = p['tok_emb'][captions]
    lens = jnp.clip(caption_lengths, 1, seq_t).astype(jnp.float32)
    mask = (jnp.arange(seq_t)[None, :] < caption_lengths[:, None]).astype(jnp.float32)
    pooled = jnp.sum(emb * mask[:, :, None], axis=1) / lens[:, None]
    t = pooled @ p['txt_w'] + p['txt_b']
    text_embs = t / jnp.linalg.norm(t, axis=-1, keepdims=True)
    return embed_AB, text_embs


if __name__ == "__main__":
    key = jax.random.PRNGKey(0)
    kp, ka, kb, kc = jax.random.split(key, 4)

    B, J, T = 2, 22, 8
    latentD = 32

    params = init_params(kp, num_body_joints=J, num_neurons=64,
                         num_neurons_mini=32, latentD=latentD,
                         vocab_size=100, d_model=32)
    folded = fold_params(params)

    poses_A = jax.random.normal(ka, (B, J, 3), jnp.float32)
    poses_B = jax.random.normal(kb, (B, J, 3), jnp.float32)
    captions = jax.random.randint(kc, (B, T), 0, 100, dtype=jnp.int32)
    caption_lengths = jnp.array([8, 5], dtype=jnp.int32)

    embed_AB, text_embs = pair_text_forward(folded, poses_A, captions,
                                            caption_lengths, poses_B)
    jax.block_until_ready((embed_AB, text_embs))

    assert embed_AB.shape == (B, latentD) and embed_AB.dtype == jnp.float32
    assert text_embs.shape == (B, latentD) and text_embs.dtype == jnp.float32
    assert bool(jnp.all(jnp.isfinite(embed_AB))) and bool(jnp.all(jnp.isfinite(text_embs)))

    # Sanity check against the unfolded f32 pure-JAX reference (loose tolerance: the
    # kernel intentionally runs bf16 activations/weights on the MXU with f32 accumulation).
    ref_AB, ref_txt = reference_forward(params, poses_A, captions, caption_lengths, poses_B)
    assert float(jnp.max(jnp.abs(embed_AB - ref_AB))) < 7e-2
    assert float(jnp.max(jnp.abs(text_embs - ref_txt))) < 7e-2

    print("KERNEL_OK")
</pallas_src>

<mosaic_0001>
module attributes {stable_mosaic.version = 11 : i64} {
  func.func @_pair_text_kernel(%arg0: i32, %arg1: memref<8x80xbf16, #tpu.memory_space<vmem>>, %arg2: memref<8x80xbf16, #tpu.memory_space<vmem>>, %arg3: memref<8x32xbf16, #tpu.memory_space<vmem>>, %arg4: memref<752x128xbf16, #tpu.memory_space<vmem>>, %arg5: memref<8x128xf32, #tpu.memory_space<vmem>>, %arg6: memref<8x128xf32, #tpu.memory_space<vmem>>, %arg7: memref<8x128xf32, #tpu.memory_space<vmem>>) attributes {dimension_semantics = [#tpu.dimension_semantics<parallel>], iteration_bounds = array<i64: 1>, scalar_prefetch = 0 : i64, scratch_operands = 0 : i64, tpu.core_type = #tpu.core_type<tc>, window_params = [{transform_indices = @transform_0, window_bounds = array<i64: 8, 80>}, {transform_indices = @transform_1, window_bounds = array<i64: 8, 80>}, {transform_indices = @transform_2, window_bounds = array<i64: 8, 32>}, {pipeline_mode = #tpu.pipeline_mode<synchronous>, transform_indices = @transform_3, window_bounds = array<i64: 752, 128>}, {pipeline_mode = #tpu.pipeline_mode<synchronous>, transform_indices = @transform_4, window_bounds = array<i64: 8, 128>}, {transform_indices = @transform_5, window_bounds = array<i64: 8, 128>}, {transform_indices = @transform_6, window_bounds = array<i64: 8, 128>}]} {
    %c0 = arith.constant 0 : index
    %c0_0 = arith.constant 0 : index
    %0 = vector.load %arg4[%c0, %c0_0] : memref<752x128xbf16, #tpu.memory_space<vmem>>, vector<80x128xbf16>
    %c80 = arith.constant 80 : index
    %c0_1 = arith.constant 0 : index
    %1 = vector.load %arg4[%c80, %c0_1] : memref<752x128xbf16, #tpu.memory_space<vmem>>, vector<128x128xbf16>
    %c208 = arith.constant 208 : index
    %c0_2 = arith.constant 0 : index
    %2 = vector.load %arg4[%c208, %c0_2] : memref<752x128xbf16, #tpu.memory_space<vmem>>, vector<128x128xbf16>
    %c336 = arith.constant 336 : index
    %c0_3 = arith.constant 0 : index
    %3 = vector.load %arg4[%c336, %c0_3] : memref<752x128xbf16, #tpu.memory_space<vmem>>, vector<128x128xbf16>
    %c464 = arith.constant 464 : index
    %c0_4 = arith.constant 0 : index
    %4 = vector.load %arg4[%c464, %c0_4] : memref<752x128xbf16, #tpu.memory_space<vmem>>, vector<128x128xbf16>
    %c592 = arith.constant 592 : index
    %c0_5 = arith.constant 0 : index
    %5 = vector.load %arg4[%c592, %c0_5] : memref<752x128xbf16, #tpu.memory_space<vmem>>, vector<128x128xbf16>
    %c720 = arith.constant 720 : index
    %c0_6 = arith.constant 0 : index
    %6 = vector.load %arg4[%c720, %c0_6] : memref<752x128xbf16, #tpu.memory_space<vmem>>, vector<32x128xbf16>
    %c0_7 = arith.constant 0 : index
    %c0_8 = arith.constant 0 : index
    %7 = vector.load %arg1[%c0_7, %c0_8] : memref<8x80xbf16, #tpu.memory_space<vmem>>, vector<8x80xbf16>
    %cst = arith.constant dense<0.000000e+00> : vector<8x128xf32>
    %8 = tpu.matmul %7, %0, %cst {dimension_numbers = #tpu.dot_dimension_numbers<[1], [0], [0], [1], [0, 0, 1, 1], [], []>} : vector<8x80xbf16>, vector<80x128xbf16>, vector<8x128xf32> -> vector<8x128xf32>
    %c0_9 = arith.constant 0 : index
    %c0_10 = arith.constant 0 : index
    %9 = vector.load %arg5[%c0_9, %c0_10] : memref<8x128xf32, #tpu.memory_space<vmem>>, vector<1x128xf32>
    %10 = vector.broadcast %9 : vector<1x128xf32> to vector<8x128xf32>
    %11 = arith.addf %8, %10 : vector<8x128xf32>
    %cst_11 = arith.constant 0.000000e+00 : f32
    %12 = vector.broadcast %cst_11 : f32 to vector<8x128xf32>
    %13 = arith.cmpf ogt, %11, %12 : vector<8x128xf32>
    %cst_12 = arith.constant 0.00999999977 : f32
    %14 = vector.broadcast %cst_12 : f32 to vector<8x128xf32>
    %15 = arith.mulf %14, %11 : vector<8x128xf32>
    %16 = arith.select %13, %11, %15 : vector<8x128xi1>, vector<8x128xf32>
    %17 = arith.truncf %16 : vector<8x128xf32> to vector<8x128xbf16>
    %cst_13 = arith.constant dense<0.000000e+00> : vector<8x128xf32>
    %18 = tpu.matmul %17, %1, %cst_13 {dimension_numbers = #tpu.dot_dimension_numbers<[1], [0], [0], [1], [0, 0, 1, 1], [], []>} : vector<8x128xbf16>, vector<128x128xbf16>, vector<8x128xf32> -> vector<8x128xf32>
    %c1 = arith.constant 1 : index
    %c0_14 = arith.constant 0 : index
    %19 = vector.load %arg5[%c1, %c0_14] : memref<8x128xf32, #tpu.memory_space<vmem>>, vector<1x128xf32>
    %20 = vector.broadcast %19 : vector<1x128xf32> to vector<8x128xf32>
    %21 = arith.addf %18, %20 : vector<8x128xf32>
    %c0_15 = arith.constant 0 : index
    %c0_16 = arith.constant 0 : index
    %22 = vector.load %arg2[%c0_15, %c0_16] : memref<8x80xbf16, #tpu.memory_space<vmem>>, vector<8x80xbf16>
    %cst_17 = arith.constant dense<0.000000e+00> : vector<8x128xf32>
    %23 = tpu.matmul %22, %0, %cst_17 {dimension_numbers = #tpu.dot_dimension_numbers<[1], [0], [0], [1], [0, 0, 1, 1], [], []>} : vector<8x80xbf16>, vector<80x128xbf16>, vector<8x128xf32> -> vector<8x128xf32>
    %c0_18 = arith.constant 0 : index
    %c0_19 = arith.constant 0 : index
    %24 = vector.load %arg5[%c0_18, %c0_19] : memref<8x128xf32, #tpu.memory_space<vmem>>, vector<1x128xf32>
    %25 = vector.broadcast %24 : vector<1x128xf32> to vector<8x128xf32>
    %26 = arith.addf %23, %25 : vector<8x128xf32>
    %cst_20 = arith.constant 0.000000e+00 : f32
    %27 = vector.broadcast %cst_20 : f32 to vector<8x128xf32>
    %28 = arith.cmpf ogt, %26, %27 : vector<8x128xf32>
    %cst_21 = arith.constant 0.00999999977 : f32
    %29 = vector.broadcast %cst_21 : f32 to vector<8x128xf32>
    %30 = arith.mulf %29, %26 : vector<8x128xf32>
    %31 = arith.select %28, %26, %30 : vector<8x128xi1>, vector<8x128xf32>
    %32 = arith.truncf %31 : vector<8x128xf32> to vector<8x128xbf16>
    %cst_22 = arith.constant dense<0.000000e+00> : vector<8x128xf32>
    %33 = tpu.matmul %32, %1, %cst_22 {dimension_numbers = #tpu.dot_dimension_numbers<[1], [0], [0], [1], [0, 0, 1, 1], [], []>} : vector<8x128xbf16>, vector<128x128xbf16>, vector<8x128xf32> -> vector<8x128xf32>
    %c1_23 = arith.constant 1 : index
    %c0_24 = arith.constant 0 : index
    %34 = vector.load %arg5[%c1_23, %c0_24] : memref<8x128xf32, #tpu.memory_space<vmem>>, vector<1x128xf32>
    %35 = vector.broadcast %34 : vector<1x128xf32> to vector<8x128xf32>
    %36 = arith.addf %33, %35 : vector<8x128xf32>
    %37 = arith.truncf %21 : vector<8x128xf32> to vector<8x128xbf16>
    %cst_25 = arith.constant dense<0.000000e+00> : vector<8x128xf32>
    %38 = tpu.matmul %37, %2, %cst_25 {dimension_numbers = #tpu.dot_dimension_numbers<[1], [0], [0], [1], [0, 0, 1, 1], [], []>} : vector<8x128xbf16>, vector<128x128xbf16>, vector<8x128xf32> -> vector<8x128xf32>
    %39 = arith.truncf %36 : vector<8x128xf32> to vector<8x128xbf16>
    %cst_26 = arith.constant dense<0.000000e+00> : vector<8x128xf32>
    %40 = tpu.matmul %39, %3, %cst_26 {dimension_numbers = #tpu.dot_dimension_numbers<[1], [0], [0], [1], [0, 0, 1, 1], [], []>} : vector<8x128xbf16>, vector<128x128xbf16>, vector<8x128xf32> -> vector<8x128xf32>
    %41 = arith.addf %38, %40 : vector<8x128xf32>
    %c2 = arith.constant 2 : index
    %c0_27 = arith.constant 0 : index
    %42 = vector.load %arg5[%c2, %c0_27] : memref<8x128xf32, #tpu.memory_space<vmem>>, vector<1x128xf32>
    %43 = vector.broadcast %42 : vector<1x128xf32> to vector<8x128xf32>
    %44 = arith.addf %41, %43 : vector<8x128xf32>
    %cst_28 = arith.constant 0.000000e+00 : f32
    %45 = vector.broadcast %cst_28 : f32 to vector<8x128xf32>
    %46 = arith.cmpf ogt, %44, %45 : vector<8x128xf32>
    %cst_29 = arith.constant 0.00999999977 : f32
    %47 = vector.broadcast %cst_29 : f32 to vector<8x128xf32>
    %48 = arith.mulf %47, %44 : vector<8x128xf32>
    %49 = arith.select %46, %44, %48 : vector<8x128xi1>, vector<8x128xf32>
    %50 = arith.truncf %49 : vector<8x128xf32> to vector<8x128xbf16>
    %cst_30 = arith.constant dense<0.000000e+00> : vector<8x128xf32>
    %51 = tpu.matmul %50, %4, %cst_30 {dimension_numbers = #tpu.dot_dimension_numbers<[1], [0], [0], [1], [0, 0, 1, 1], [], []>} : vector<8x128xbf16>, vector<128x128xbf16>, vector<8x128xf32> -> vector<8x128xf32>
    %c3 = arith.constant 3 : index
    %c0_31 = arith.constant 0 : index
    %52 = vector.load %arg5[%c3, %c0_31] : memref<8x128xf32, #tpu.memory_space<vmem>>, vector<1x128xf32>
    %53 = vector.broadcast %52 : vector<1x128xf32> to vector<8x128xf32>
    %54 = arith.addf %51, %53 : vector<8x128xf32>
    %cst_32 = arith.constant 0.000000e+00 : f32
    %55 = vector.broadcast %cst_32 : f32 to vector<8x128xf32>
    %56 = arith.cmpf ogt, %54, %55 : vector<8x128xf32>
    %cst_33 = arith.constant 0.00999999977 : f32
    %57 = vector.broadcast %cst_33 : f32 to vector<8x128xf32>
    %58 = arith.mulf %57, %54 : vector<8x128xf32>
    %59 = arith.select %56, %54, %58 : vector<8x128xi1>, vector<8x128xf32>
    %60 = arith.truncf %59 : vector<8x128xf32> to vector<8x128xbf16>
    %cst_34 = arith.constant dense<0.000000e+00> : vector<8x128xf32>
    %61 = tpu.matmul %60, %5, %cst_34 {dimension_numbers = #tpu.dot_dimension_numbers<[1], [0], [0], [1], [0, 0, 1, 1], [], []>} : vector<8x128xbf16>, vector<128x128xbf16>, vector<8x128xf32> -> vector<8x128xf32>
    %c4 = arith.constant 4 : index
    %c0_35 = arith.constant 0 : index
    %62 = vector.load %arg5[%c4, %c0_35] : memref<8x128xf32, #tpu.memory_space<vmem>>, vector<1x128xf32>
    %63 = vector.broadcast %62 : vector<1x128xf32> to vector<8x128xf32>
    %64 = arith.addf %61, %63 : vector<8x128xf32>
    %cst_36 = arith.constant 0.000000e+00 : f32
    %65 = vector.broadcast %cst_36 : f32 to vector<8x128xf32>
    %66 = arith.cmpf ogt, %64, %65 : vector<8x128xf32>
    %cst_37 = arith.constant 0.00999999977 : f32
    %67 = vector.broadcast %cst_37 : f32 to vector<8x128xf32>
    %68 = arith.mulf %67, %64 : vector<8x128xf32>
    %69 = arith.select %66, %64, %68 : vector<8x128xi1>, vector<8x128xf32>
    %70 = arith.mulf %69, %69 : vector<8x128xf32>
    %cst_38 = arith.constant dense<0.000000e+00> : vector<8xf32>
    %71 = vector.multi_reduction <add>, %70, %cst_38 [1] : vector<8x128xf32> to vector<8xf32>
    %72 = vector.shape_cast %71 : vector<8xf32> to vector<8x1xf32>
    %cst_39 = arith.constant 9.99999996E-13 : f32
    %73 = vector.broadcast %cst_39 : f32 to vector<8x1xf32>
    %74 = arith.maximumf %72, %73 : vector<8x1xf32>
    %75 = math.rsqrt %74 : vector<8x1xf32>
    %76 = vector.broadcast %75 : vector<8x1xf32> to vector<8x128xf32>
    %77 = arith.mulf %69, %76 : vector<8x128xf32>
    %c0_40 = arith.constant 0 : index
    %c0_41 = arith.constant 0 : index
    %78 = vector.load %arg6[%c0_40, %c0_41] : memref<8x128xf32, #tpu.memory_space<vmem>>, vector<8x128xf32>
    tpu.vector_store %arg6[%c0_40, %c0_41], %77 {strides = array<i32>} : memref<8x128xf32, #tpu.memory_space<vmem>>, vector<8x128xf32>,
    %c0_42 = arith.constant 0 : index
    %c0_43 = arith.constant 0 : index
    %79 = vector.load %arg3[%c0_42, %c0_43] : memref<8x32xbf16, #tpu.memory_space<vmem>>, vector<8x32xbf16>
    %cst_44 = arith.constant dense<0.000000e+00> : vector<8x128xf32>
    %80 = tpu.matmul %79, %6, %cst_44 {dimension_numbers = #tpu.dot_dimension_numbers<[1], [0], [0], [1], [0, 0, 1, 1], [], []>} : vector<8x32xbf16>, vector<32x128xbf16>, vector<8x128xf32> -> vector<8x128xf32>
    %c5 = arith.constant 5 : index
    %c0_45 = arith.constant 0 : index
    %81 = vector.load %arg5[%c5, %c0_45] : memref<8x128xf32, #tpu.memory_space<vmem>>, vector<1x128xf32>
    %82 = vector.broadcast %81 : vector<1x128xf32> to vector<8x128xf32>
    %83 = arith.addf %80, %82 : vector<8x128xf32>
    %84 = arith.mulf %83, %83 : vector<8x128xf32>
    %cst_46 = arith.constant dense<0.000000e+00> : vector<8xf32>
    %85 = vector.multi_reduction <add>, %84, %cst_46 [1] : vector<8x128xf32> to vector<8xf32>
    %86 = vector.shape_cast %85 : vector<8xf32> to vector<8x1xf32>
    %cst_47 = arith.constant 9.99999996E-13 : f32
    %87 = vector.broadcast %cst_47 : f32 to vector<8x1xf32>
    %88 = arith.maximumf %86, %87 : vector<8x1xf32>
    %89 = math.rsqrt %88 : vector<8x1xf32>
    %90 = vector.broadcast %89 : vector<8x1xf32> to vector<8x128xf32>
    %91 = arith.mulf %83, %90 : vector<8x128xf32>
    %c0_48 = arith.constant 0 : index
    %c0_49 = arith.constant 0 : index
    %92 = vector.load %arg7[%c0_48, %c0_49] : memref<8x128xf32, #tpu.memory_space<vmem>>, vector<8x128xf32>
    tpu.vector_store %arg7[%c0_48, %c0_49], %91 {strides = array<i32>} : memref<8x128xf32, #tpu.memory_space<vmem>>, vector<8x128xf32>,
    return
  }
  func.func @transform_0(%arg0: i32) -> (i32, i32) {
    %c0_i32 = arith.constant 0 : i32
    %c0_i32_0 = arith.constant 0 : i32
    return %arg0, %c0_i32 : i32, i32
  }
  func.func @transform_1(%arg0: i32) -> (i32, i32) {
    %c0_i32 = arith.constant 0 : i32
    %c0_i32_0 = arith.constant 0 : i32
    return %arg0, %c0_i32 : i32, i32
  }
  func.func @transform_2(%arg0: i32) -> (i32, i32) {
    %c0_i32 = arith.constant 0 : i32
    %c0_i32_0 = arith.constant 0 : i32
    return %arg0, %c0_i32 : i32, i32
  }
  func.func @transform_3(%arg0: i32) -> (i32, i32) {
    %c0_i32 = arith.constant 0 : i32
    %c0_i32_0 = arith.constant 0 : i32
    %c0_i32_1 = arith.constant 0 : i32
    return %c0_i32, %c0_i32_0 : i32, i32
  }
  func.func @transform_4(%arg0: i32) -> (i32, i32) {
    %c0_i32 = arith.constant 0 : i32
    %c0_i32_0 = arith.constant 0 : i32
    %c0_i32_1 = arith.constant 0 : i32
    return %c0_i32, %c0_i32_0 : i32, i32
  }
  func.func @transform_5(%arg0: i32) -> (i32, i32) {
    %c0_i32 = arith.constant 0 : i32
    %c0_i32_0 = arith.constant 0 : i32
    return %arg0, %c0_i32 : i32, i32
  }
  func.func @transform_6(%arg0: i32) -> (i32, i32) {
    %c0_i32 = arith.constant 0 : i32
    %c0_i32_0 = arith.constant 0 : i32
    return %arg0, %c0_i32 : i32, i32
  }
}

</mosaic_0001>

<llo_original>
// kernel: tpu_custom_call.1
$region0: #{tpu_custom_call.1}
  #allocation0 [shape = 'u32[]', space=smem, size = 0x4, offset = 0x4, fixed_abs, tag = 'smem constant byte address 0x4 - core index']
  #allocation1 [shape = 'u32[144,128]{1,0:T(1,128)}', space=vmem, size = 0x12000, scoped, tag = 'internal scratch']
  %s0 = inlined_call_operand.hbm [shape: bf16[8,80], index: 0, kind: input, shape index: {}]
  %s1 = inlined_call_operand.hbm [shape: bf16[8,80], index: 1, kind: input, shape index: {}]
  %s2 = inlined_call_operand.vmem [shape: bf16[8,32], index: 2, kind: input, shape index: {}]
  %s3 = inlined_call_operand.hbm [shape: bf16[752,128], index: 3, kind: input, shape index: {}]
  %s4 = inlined_call_operand.vmem [shape: f32[8,128], index: 4, kind: input, shape index: {}]
  %s5 = inlined_call_operand.hbm [shape: f32[8,128], index: 5, kind: output, shape index: {0}]
  %s6 = inlined_call_operand.hbm [shape: f32[8,128], index: 6, kind: output, shape index: {1}]
  %7 = xla_tuple %s5, %s6
  %s8 = sld [smem:[#allocation0]]
  $region50: #{tpu_custom_call.1} parent=0
    _
  %s10 = ssub.s32 1, %s8
  %s11 = scalar_select 0, %s10, %s8
  $region1: #{tpu_custom_call.1} parent=0
    #allocation2 [shape = 'u8[2048]{0}', space=vmem, size = 0x800, scoped, tag = 'input window, operand 0, single buffered']
    #allocation3 [shape = 's32[1]{0}', space=sflag, size = 0x4, scoped, tag = 'scoped memory for tpu_custom_call.1']
    #allocation4 [shape = 's32[1]{0}', space=sflag, size = 0x4, scoped, tag = 'scoped memory for tpu_custom_call.1']
    #allocation5 [shape = 'u8[2048]{0}', space=vmem, size = 0x800, scoped, tag = 'input window, operand 1, single buffered']
    #allocation6 [shape = 's32[1]{0}', space=sflag, size = 0x4, scoped, tag = 'scoped memory for tpu_custom_call.1']
    #allocation7 [shape = 'u8[192512]{0}', space=vmem, size = 0x2f000, scoped, tag = 'input window, operand 3, single buffered']
    #allocation8 [shape = 'u8[4096]{0}', space=vmem, size = 0x1000, scoped, tag = 'output window, operand 0, single buffered']
    #allocation9 [shape = 'u8[4096]{0}', space=vmem, size = 0x1000, scoped, tag = 'output window, operand 1, single buffered']
    #allocation10 [shape = 's32[1]{0}', space=sflag, size = 0x4, scoped, tag = 'scoped memory for tpu_custom_call.1']
    %12 = vsyncpa [#allocation3], 0
    %13 = vsyncpa [#allocation6], 0
    %14 = vsyncpa [#allocation4], 0
    %15 = vsyncpa [#allocation10], 0
    // Predicated region
    $region2: #{tpu_custom_call.1} parent=1 // pred_check
      _
    $region3: #{tpu_custom_call.1} parent=1 // pred_check_branch
      %17 = sbr.rel (0) target = $region5
    $region4: #{tpu_custom_call.1} parent=1 // pred_region
      %s19 = ssub.s32 64, 64
      %20 = vsyncadd [#allocation3], %s19
      %s22 = sshll.u32 [#allocation2], 4
      %s23 = int_to_ptr.vmem [resolvable:$true] %s22
      %25 = dma.hbm_to_vmem [thread:$0]  %s0, 64, %s23, [#allocation3]
    $region5: #{tpu_custom_call.1} parent=1 // pred_fallthru
      _
    // Predicated region
    $region6: #{tpu_custom_call.1} parent=1 // pred_check
      _
    $region7: #{tpu_custom_call.1} parent=1 // pred_check_branch
      %27 = sbr.rel (0) target = $region9
    $region8: #{tpu_custom_call.1} parent=1 // pred_region
      %s29 = ssub.s32 64, 64
      %30 = vsyncadd [#allocation6], %s29
      %s32 = sshll.u32 [#allocation5], 4
      %s33 = int_to_ptr.vmem [resolvable:$true] %s32
      %35 = dma.hbm_to_vmem [thread:$0]  %s1, 64, %s33, [#allocation6]
    $region9: #{tpu_custom_call.1} parent=1 // pred_fallthru
      _
    // Predicated region
    $region10: #{tpu_custom_call.1} parent=1 // pred_check
      _
    $region11: #{tpu_custom_call.1} parent=1 // pred_check_branch
      %37 = sbr.rel (0) target = $region13
    $region12: #{tpu_custom_call.1} parent=1 // pred_region
      _
    $region13: #{tpu_custom_call.1} parent=1 // pred_fallthru
      _
    // Predicated region
    $region14: #{tpu_custom_call.1} parent=1 // pred_check
      _
    $region15: #{tpu_custom_call.1} parent=1 // pred_check_branch
      %39 = sbr.rel (0) target = $region17
    $region16: #{tpu_custom_call.1} parent=1 // pred_region
      %s41 = ssub.s32 6016, 6016
      %42 = vsyncadd [#allocation6], %s41
      %s43 = sshll.u32 [#allocation7], 4
      %s44 = int_to_ptr.vmem [resolvable:$true] %s43
      %49 = dma.hbm_to_vmem [thread:$0]  %s3, 6016, %s44, [#allocation6], 64, 64, 4
    $region17: #{tpu_custom_call.1} parent=1 // pred_fallthru
      _
    // Predicated region
    $region18: #{tpu_custom_call.1} parent=1 // pred_check
      _
    $region19: #{tpu_custom_call.1} parent=1 // pred_check_branch
      %51 = sbr.rel (0) target = $region21
    $region20: #{tpu_custom_call.1} parent=1 // pred_region
      _
    $region21: #{tpu_custom_call.1} parent=1 // pred_fallthru
      _
    // Predicated region
    $region22: #{tpu_custom_call.1} parent=1 // pred_check
      _
    $region23: #{tpu_custom_call.1} parent=1 // pred_check_branch
      %53 = sbr.rel (0) target = $region25
    $region24: #{tpu_custom_call.1} parent=1 // pred_region
      %54 = dma.done [#allocation3], 64
    $region25: #{tpu_custom_call.1} parent=1 // pred_fallthru
      _
    // Predicated region
    $region26: #{tpu_custom_call.1} parent=1 // pred_check
      _
    $region27: #{tpu_custom_call.1} parent=1 // pred_check_branch
      %56 = sbr.rel (0) target = $region29
    $region28: #{tpu_custom_call.1} parent=1 // pred_region
      %57 = dma.done [#allocation6], 64
    $region29: #{tpu_custom_call.1} parent=1 // pred_fallthru
      _
    // Predicated region
    $region30: #{tpu_custom_call.1} parent=1 // pred_check
      _
    $region31: #{tpu_custom_call.1} parent=1 // pred_check_branch
      %59 = sbr.rel (0) target = $region33
    $region32: #{tpu_custom_call.1} parent=1 // pred_region
      %60 = dma.done [#allocation6], 6016
    $region33: #{tpu_custom_call.1} parent=1 // pred_fallthru
      _
    %v62 = vld [vmem:[#allocation7] sm:$0xf]
    %v63 = vld [vmem:[#allocation7 + $0x4] sm:$0xf]
    %v64 = vld [vmem:[#allocation7 + $0x8] sm:$0xf]
    %v65 = vld [vmem:[#allocation7 + $0xc] sm:$0xf]
    %v66 = vld [vmem:[#allocation7 + $0x10] sm:$0xf]
    %v67 = vld [vmem:[#allocation7 + $0x14] sm:$0xf]
    %v68 = vld [vmem:[#allocation7 + $0x18] sm:$0xf]
    %v69 = vld [vmem:[#allocation7 + $0x1c] sm:$0xf]
    %v70 = vld [vmem:[#allocation7 + $0x20] sm:$0xf]
    %v71 = vld [vmem:[#allocation7 + $0x24] sm:$0xf]
    %v72 = vld [vmem:[#allocation7 + $0x28] sm:$0xf]
    %v73 = vld [vmem:[#allocation7 + $0x2c] sm:$0xf]
    %v74 = vld [vmem:[#allocation7 + $0x30] sm:$0xf]
    %v75 = vld [vmem:[#allocation7 + $0x34] sm:$0xf]
    %v76 = vld [vmem:[#allocation7 + $0x38] sm:$0xf]
    %v77 = vld [vmem:[#allocation7 + $0x3c] sm:$0xf]
    %v78 = vld [vmem:[#allocation7 + $0x40] sm:$0xf]
    %v79 = vld [vmem:[#allocation7 + $0x44] sm:$0xf]
    %v80 = vld [vmem:[#allocation7 + $0x48] sm:$0xf]
    %v81 = vld [vmem:[#allocation7 + $0x4c] sm:$0xf]
    %v82 = vld [vmem:[#allocation7 + $0x50] sm:$0xf]
    %v83 = vld [vmem:[#allocation7 + $0x54] sm:$0xf]
    %v84 = vld [vmem:[#allocation7 + $0x58] sm:$0xf]
    %v85 = vld [vmem:[#allocation7 + $0x5c] sm:$0xf]
    %v86 = vld [vmem:[#allocation7 + $0x60] sm:$0xf]
    %v87 = vld [vmem:[#allocation7 + $0x64] sm:$0xf]
    %v88 = vld [vmem:[#allocation7 + $0x68] sm:$0xf]
    %v89 = vld [vmem:[#allocation7 + $0x6c] sm:$0xf]
    %v90 = vld [vmem:[#allocation7 + $0x70] sm:$0xf]
    %v91 = vld [vmem:[#allocation7 + $0x74] sm:$0xf]
    %v92 = vld [vmem:[#allocation7 + $0x78] sm:$0xf]
    %v93 = vld [vmem:[#allocation7 + $0x7c] sm:$0xf]
    %v94 = vld [vmem:[#allocation7 + $0x80] sm:$0xf]
    %v95 = vld [vmem:[#allocation7 + $0x84] sm:$0xf]
    %v96 = vld [vmem:[#allocation7 + $0x88] sm:$0xf]
    %v97 = vld [vmem:[#allocation7 + $0x8c] sm:$0xf]
    %v98 = vld [vmem:[#allocation7 + $0x90] sm:$0xf]
    %v99 = vld [vmem:[#allocation7 + $0x94] sm:$0xf]
    %v100 = vld [vmem:[#allocation7 + $0x98] sm:$0xf]
    %v101 = vld [vmem:[#allocation7 + $0x9c] sm:$0xf]
    %v102 = vld [vmem:[#allocation7 + $0xa0] sm:$0xf]
    %v103 = vld [vmem:[#allocation7 + $0xa4] sm:$0xf]
    %v104 = vld [vmem:[#allocation7 + $0xa8] sm:$0xf]
    %v105 = vld [vmem:[#allocation7 + $0xac] sm:$0xf]
    %v106 = vld [vmem:[#allocation7 + $0xb0] sm:$0xf]
    %v107 = vld [vmem:[#allocation7 + $0xb4] sm:$0xf]
    %v108 = vld [vmem:[#allocation7 + $0xb8] sm:$0xf]
    %v109 = vld [vmem:[#allocation7 + $0xbc] sm:$0xf]
    %v110 = vld [vmem:[#allocation7 + $0xc0] sm:$0xf]
    %v111 = vld [vmem:[#allocation7 + $0xc4] sm:$0xf]
    %v112 = vld [vmem:[#allocation7 + $0xc8] sm:$0xf]
    %v113 = vld [vmem:[#allocation7 + $0xcc] sm:$0xf]
    %v114 = vld [vmem:[#allocation7 + $0xd0] sm:$0xf]
    %v115 = vld [vmem:[#allocation7 + $0xd4] sm:$0xf]
    %v116 = vld [vmem:[#allocation7 + $0xd8] sm:$0xf]
    %v117 = vld [vmem:[#allocation7 + $0xdc] sm:$0xf]
    %v118 = vld [vmem:[#allocation7 + $0xe0] sm:$0xf]
    %v119 = vld [vmem:[#allocation7 + $0xe4] sm:$0xf]
    %v120 = vld [vmem:[#allocation7 + $0xe8] sm:$0xf]
    %v121 = vld [vmem:[#allocation7 + $0xec] sm:$0xf]
    %v122 = vld [vmem:[#allocation7 + $0xf0] sm:$0xf]
    %v123 = vld [vmem:[#allocation7 + $0xf4] sm:$0xf]
    %v124 = vld [vmem:[#allocation7 + $0xf8] sm:$0xf]
    %v125 = vld [vmem:[#allocation7 + $0xfc] sm:$0xf]
    %v126 = vld [vmem:[#allocation7 + $0x100] sm:$0xf]
    %v127 = vld [vmem:[#allocation7 + $0x104] sm:$0xf]
    %v128 = vld [vmem:[#allocation7 + $0x108] sm:$0xf]
    %v129 = vld [vmem:[#allocation7 + $0x10c] sm:$0xf]
    %v130 = vld [vmem:[#allocation7 + $0x110] sm:$0xf]
    %v131 = vld [vmem:[#allocation7 + $0x114] sm:$0xf]
    %v132 = vld [vmem:[#allocation7 + $0x118] sm:$0xf]
    %v133 = vld [vmem:[#allocation7 + $0x11c] sm:$0xf]
    %v134 = vld [vmem:[#allocation7 + $0x120] sm:$0xf]
    %v135 = vld [vmem:[#allocation7 + $0x124] sm:$0xf]
    %v136 = vld [vmem:[#allocation7 + $0x128] sm:$0xf]
    %v137 = vld [vmem:[#allocation7 + $0x12c] sm:$0xf]
    %v138 = vld [vmem:[#allocation7 + $0x130] sm:$0xf]
    %v139 = vld [vmem:[#allocation7 + $0x134] sm:$0xf]
    %v140 = vld [vmem:[#allocation7 + $0x138] sm:$0xf]
    %v141 = vld [vmem:[#allocation7 + $0x13c] sm:$0xf]
    %v142 = vld [vmem:[#allocation7 + $0x140] sm:$0xf]
    %v143 = vld [vmem:[#allocation7 + $0x144] sm:$0xf]
    %v144 = vld [vmem:[#allocation7 + $0x148] sm:$0xf]
    %v145 = vld [vmem:[#allocation7 + $0x14c] sm:$0xf]
    %v146 = vld [vmem:[#allocation7 + $0x150] sm:$0xf]
    %v147 = vld [vmem:[#allocation7 + $0x154] sm:$0xf]
    %v148 = vld [vmem:[#allocation7 + $0x158] sm:$0xf]
    %v149 = vld [vmem:[#allocation7 + $0x15c] sm:$0xf]
    %v150 = vld [vmem:[#allocation7 + $0x160] sm:$0xf]
    %v151 = vld [vmem:[#allocation7 + $0x164] sm:$0xf]
    %v152 = vld [vmem:[#allocation7 + $0x168] sm:$0xf]
    %v153 = vld [vmem:[#allocation7 + $0x16c] sm:$0xf]
    %v154 = vld [vmem:[#allocation7 + $0x170] sm:$0xf]
    %v155 = vld [vmem:[#allocation7 + $0x174] sm:$0xf]
    %v156 = vld [vmem:[#allocation2] sm:$0xf]
    %v157 = vld [vmem:[%s4] sm:$0x1]
    %v158 = vlaneseq
    %v159 = vshrl.u32 %v158, 7
    %v160 = vsub.s32 0, %v159
    %v161 = vrot.slane %v157, %v160
    %v172 = vunpack.c.l.b16 %v62
    %v173 = vunpack.c.l.b16 %v63
    %v174 = vunpack.c.l.b16 %v64
    %v175 = vunpack.c.l.b16 %v65
    %v176 = vunpack.c.l.b16 %v66
    %v177 = vunpack.c.l.b16 %v67
    %v178 = vunpack.c.l.b16 %v68
    %v179 = vunpack.c.l.b16 %v69
    %v180 = vunpack.c.l.b16 %v70
    %v181 = vunpack.c.l.b16 %v71
    %v182 = vpack.c.b16 %v173, %v172
    %v183 = vpack.c.b16 %v175, %v174
    %v184 = vpack.c.b16 %v177, %v176
    %v185 = vpack.c.b16 %v179, %v178
    %v186 = vpack.c.b16 %v181, %v180
    %vm192 = vcmask 654336
    %v194 = vsel %vm192, %v156, 0
    %196 = vmatprep.subr.bf16.mxu0 0
    %197 = vmatpush1.bf16.msra.mxu0 %v182
    %198 = vmatprep.subr.bf16.mxu0 0
    %199 = vmatpush1.bf16.msra.mxu0 %v183
    %200 = vmatprep.subr.bf16.mxu0 0
    %201 = vmatpush1.bf16.msra.mxu0 %v184
    %202 = vmatprep.subr.bf16.mxu0 0
    %203 = vmatpush1.bf16.msra.mxu0 %v185
    %204 = vmatprep.subr.bf16.mxu0 0
    %205 = vmatpush1.bf16.msra.mxu0 %v186
    %206 = vmatprep.subr.bf16.mxu0 0
    %207 = vmatpush1.bf16.msra.mxu0 0
    %208 = vmatprep.subr.bf16.mxu0 0
    %209 = vmatpush1.bf16.msra.mxu0 0
    %210 = vmatprep.subr.bf16.mxu0 0
    %211 = vmatpush1.bf16.msra.mxu0 0
    %212 = vmatprep.subr.bf16.mxu0 0
    %213 = vmatpush1.bf16.msra.mxu0 0
    %214 = vmatprep.subr.bf16.mxu0 0
    %215 = vmatpush1.bf16.msra.mxu0 0
    %216 = vmatprep.subr.bf16.mxu0 0
    %217 = vmatpush1.bf16.msra.mxu0 0
    %218 = vmatprep.subr.bf16.mxu0 0
    %219 = vmatpush1.bf16.msra.mxu0 0
    %220 = vmatprep.subr.bf16.mxu0 0
    %221 = vmatpush1.bf16.msra.mxu0 0
    %222 = vmatprep.subr.bf16.mxu0 0
    %223 = vmatpush1.bf16.msra.mxu0 0
    %224 = vmatprep.subr.bf16.mxu0 0
    %225 = vmatpush1.bf16.msra.mxu0 0
    %226 = vmatprep.subr.bf16.mxu0 0
    %227 = vmatpush1.bf16.msra.mxu0 0
    %228 = vmatprep.mubr.bf16.mxu0 0
    %229 = vmatmul.mubr.bf16.gmra.mrb[0].mxu0 %v194
    %v230 = vpop.f32.mrb[0].mxu0
    %v231 = vadd.f32 %v161, %v230
    %v232 = vpop.f32.mrb[0].mxu0
    %v233 = vpop.f32.mrb[0].mxu0
    %v234 = vpop.f32.mrb[0].mxu0
    %235 = vdwg.mxu0
    %vm236 = vcmp.gt.f32.partialorder %v231, 0.0
    %v237 = vmul.f32 %v231, 0.01
    %v238 = vsel %vm236, %v231, %v237
    %v239 = vpack.c.bf16 %v238, %v238
    %v240 = vld [vmem:[%s4 + $0x1] sm:$0x1]
    %v241 = vlaneseq
    %v242 = vshrl.u32 %v241, 7
    %v243 = vsub.s32 0, %v242
    %v244 = vrot.slane %v240, %v243
    %v261 = vunpack.c.l.b16 %v72
    %v262 = vunpack.c.l.b16 %v73
    %v263 = vunpack.c.l.b16 %v74
    %v264 = vunpack.c.l.b16 %v75
    %v265 = vunpack.c.l.b16 %v76
    %v266 = vunpack.c.l.b16 %v77
    %v267 = vunpack.c.l.b16 %v78
    %v268 = vunpack.c.l.b16 %v79
    %v269 = vunpack.c.l.b16 %v80
    %v270 = vunpack.c.l.b16 %v81
    %v271 = vunpack.c.l.b16 %v82
    %v272 = vunpack.c.l.b16 %v83
    %v273 = vunpack.c.l.b16 %v84
    %v274 = vunpack.c.l.b16 %v85
    %v275 = vunpack.c.l.b16 %v86
    %v276 = vunpack.c.l.b16 %v87
    %v277 = vpack.c.b16 %v262, %v261
    %v278 = vpack.c.b16 %v264, %v263
    %v279 = vpack.c.b16 %v266, %v265
    %v280 = vpack.c.b16 %v268, %v267
    %v281 = vpack.c.b16 %v270, %v269
    %v282 = vpack.c.b16 %v272, %v271
    %v283 = vpack.c.b16 %v274, %v273
    %v284 = vpack.c.b16 %v276, %v275
    %293 = vmatprep.subr.bf16.mxu0 0
    %294 = vmatpush1.bf16.msra.mxu0 %v277
    %295 = vmatprep.subr.bf16.mxu0 0
    %296 = vmatpush1.bf16.msra.mxu0 %v278
    %297 = vmatprep.subr.bf16.mxu0 0
    %298 = vmatpush1.bf16.msra.mxu0 %v279
    %299 = vmatprep.subr.bf16.mxu0 0
    %300 = vmatpush1.bf16.msra.mxu0 %v280
    %301 = vmatprep.subr.bf16.mxu0 0
    %302 = vmatpush1.bf16.msra.mxu0 %v281
    %303 = vmatprep.subr.bf16.mxu0 0
    %304 = vmatpush1.bf16.msra.mxu0 %v282
    %305 = vmatprep.subr.bf16.mxu0 0
    %306 = vmatpush1.bf16.msra.mxu0 %v283
    %307 = vmatprep.subr.bf16.mxu0 0
    %308 = vmatpush1.bf16.msra.mxu0 %v284
    %309 = vmatprep.subr.bf16.mxu0 0
    %310 = vmatpush1.bf16.msra.mxu0 0
    %311 = vmatprep.subr.bf16.mxu0 0
    %312 = vmatpush1.bf16.msra.mxu0 0
    %313 = vmatprep.subr.bf16.mxu0 0
    %314 = vmatpush1.bf16.msra.mxu0 0
    %315 = vmatprep.subr.bf16.mxu0 0
    %316 = vmatpush1.bf16.msra.mxu0 0
    %317 = vmatprep.subr.bf16.mxu0 0
    %318 = vmatpush1.bf16.msra.mxu0 0
    %319 = vmatprep.subr.bf16.mxu0 0
    %320 = vmatpush1.bf16.msra.mxu0 0
    %321 = vmatprep.subr.bf16.mxu0 0
    %322 = vmatpush1.bf16.msra.mxu0 0
    %323 = vmatprep.subr.bf16.mxu0 0
    %324 = vmatpush1.bf16.msra.mxu0 0
    %325 = vmatprep.mubr.bf16.mxu0 0
    %326 = vmatmul.mubr.bf16.gmra.mrb[0].mxu0 %v239
    %v327 = vpop.f32.mrb[0].mxu0
    %v328 = vadd.f32 %v244, %v327
    %v329 = vpop.f32.mrb[0].mxu0
    %v330 = vpop.f32.mrb[0].mxu0
    %v331 = vpop.f32.mrb[0].mxu0
    %332 = vdwg.mxu0
    %v333 = vld [vmem:[#allocation5] sm:$0xf]
    %v335 = vsel %vm192, %v333, 0
    %337 = vmatprep.subr.bf16.mxu0 0
    %338 = vmatpush1.bf16.msra.mxu0 %v182
    %339 = vmatprep.subr.bf16.mxu0 0
    %340 = vmatpush1.bf16.msra.mxu0 %v183
    %341 = vmatprep.subr.bf16.mxu0 0
    %342 = vmatpush1.bf16.msra.mxu0 %v184
    %343 = vmatprep.subr.bf16.mxu0 0
    %344 = vmatpush1.bf16.msra.mxu0 %v185
    %345 = vmatprep.subr.bf16.mxu0 0
    %346 = vmatpush1.bf16.msra.mxu0 %v186
    %347 = vmatprep.subr.bf16.mxu0 0
    %348 = vmatpush1.bf16.msra.mxu0 0
    %349 = vmatprep.subr.bf16.mxu0 0
    %350 = vmatpush1.bf16.msra.mxu0 0
    %351 = vmatprep.subr.bf16.mxu0 0
    %352 = vmatpush1.bf16.msra.mxu0 0
    %353 = vmatprep.subr.bf16.mxu0 0
    %354 = vmatpush1.bf16.msra.mxu0 0
    %355 = vmatprep.subr.bf16.mxu0 0
    %356 = vmatpush1.bf16.msra.mxu0 0
    %357 = vmatprep.subr.bf16.mxu0 0
    %358 = vmatpush1.bf16.msra.mxu0 0
    %359 = vmatprep.subr.bf16.mxu0 0
    %360 = vmatpush1.bf16.msra.mxu0 0
    %361 = vmatprep.subr.bf16.mxu0 0
    %362 = vmatpush1.bf16.msra.mxu0 0
    %363 = vmatprep.subr.bf16.mxu0 0
    %364 = vmatpush1.bf16.msra.mxu0 0
    %365 = vmatprep.subr.bf16.mxu0 0
    %366 = vmatpush1.bf16.msra.mxu0 0
    %367 = vmatprep.subr.bf16.mxu0 0
    %368 = vmatpush1.bf16.msra.mxu0 0
    %369 = vmatprep.mubr.bf16.mxu0 0
    %370 = vmatmul.mubr.bf16.gmra.mrb[0].mxu0 %v335
    %v371 = vpop.f32.mrb[0].mxu0
    %v372 = vadd.f32 %v161, %v371
    %v373 = vpop.f32.mrb[0].mxu0
    %v374 = vpop.f32.mrb[0].mxu0
    %v375 = vpop.f32.mrb[0].mxu0
    %376 = vdwg.mxu0
    %vm377 = vcmp.gt.f32.partialorder %v372, 0.0
    %v378 = vmul.f32 %v372, 0.01
    %v379 = vsel %vm377, %v372, %v378
    %v380 = vpack.c.bf16 %v379, %v379
    %381 = vmatprep.subr.bf16.mxu0 0
    %382 = vmatpush1.bf16.msra.mxu0 %v277
    %383 = vmatprep.subr.bf16.mxu0 0
    %384 = vmatpush1.bf16.msra.mxu0 %v278
    %385 = vmatprep.subr.bf16.mxu0 0
    %386 = vmatpush1.bf16.msra.mxu0 %v279
    %387 = vmatprep.subr.bf16.mxu0 0
    %388 = vmatpush1.bf16.msra.mxu0 %v280
    %389 = vmatprep.subr.bf16.mxu0 0
    %390 = vmatpush1.bf16.msra.mxu0 %v281
    %391 = vmatprep.subr.bf16.mxu0 0
    %392 = vmatpush1.bf16.msra.mxu0 %v282
    %393 = vmatprep.subr.bf16.mxu0 0
    %394 = vmatpush1.bf16.msra.mxu0 %v283
    %395 = vmatprep.subr.bf16.mxu0 0
    %396 = vmatpush1.bf16.msra.mxu0 %v284
    %397 = vmatprep.subr.bf16.mxu0 0
    %398 = vmatpush1.bf16.msra.mxu0 0
    %399 = vmatprep.subr.bf16.mxu0 0
    %400 = vmatpush1.bf16.msra.mxu0 0
    %401 = vmatprep.subr.bf16.mxu0 0
    %402 = vmatpush1.bf16.msra.mxu0 0
    %403 = vmatprep.subr.bf16.mxu0 0
    %404 = vmatpush1.bf16.msra.mxu0 0
    %405 = vmatprep.subr.bf16.mxu0 0
    %406 = vmatpush1.bf16.msra.mxu0 0
    %407 = vmatprep.subr.bf16.mxu0 0
    %408 = vmatpush1.bf16.msra.mxu0 0
    %409 = vmatprep.subr.bf16.mxu0 0
    %410 = vmatpush1.bf16.msra.mxu0 0
    %411 = vmatprep.subr.bf16.mxu0 0
    %412 = vmatpush1.bf16.msra.mxu0 0
    %413 = vmatprep.mubr.bf16.mxu0 0
    %414 = vmatmul.mubr.bf16.gmra.mrb[0].mxu0 %v380
    %v415 = vpop.f32.mrb[0].mxu0
    %v416 = vadd.f32 %v244, %v415
    %v417 = vpop.f32.mrb[0].mxu0
    %v418 = vpop.f32.mrb[0].mxu0
    %v419 = vpop.f32.mrb[0].mxu0
    %420 = vdwg.mxu0
    %v421 = vpack.c.bf16 %v328, %v328
    %v422 = vpack.c.bf16 %v416, %v416
    %v439 = vunpack.c.l.b16 %v104
    %v440 = vunpack.c.l.b16 %v105
    %v441 = vunpack.c.l.b16 %v106
    %v442 = vunpack.c.l.b16 %v107
    %v443 = vunpack.c.l.b16 %v108
    %v444 = vunpack.c.l.b16 %v109
    %v445 = vunpack.c.l.b16 %v110
    %v446 = vunpack.c.l.b16 %v111
    %v447 = vunpack.c.l.b16 %v112
    %v448 = vunpack.c.l.b16 %v113
    %v449 = vunpack.c.l.b16 %v114
    %v450 = vunpack.c.l.b16 %v115
    %v451 = vunpack.c.l.b16 %v116
    %v452 = vunpack.c.l.b16 %v117
    %v453 = vunpack.c.l.b16 %v118
    %v454 = vunpack.c.l.b16 %v119
    %v455 = vpack.c.b16 %v440, %v439
    %v456 = vpack.c.b16 %v442, %v441
    %v457 = vpack.c.b16 %v444, %v443
    %v458 = vpack.c.b16 %v446, %v445
    %v459 = vpack.c.b16 %v448, %v447
    %v460 = vpack.c.b16 %v450, %v449
    %v461 = vpack.c.b16 %v452, %v451
    %v462 = vpack.c.b16 %v454, %v453
    %471 = vmatprep.subr.bf16.mxu0 0
    %472 = vmatpush1.bf16.msra.mxu0 %v455
    %473 = vmatprep.subr.bf16.mxu0 0
    %474 = vmatpush1.bf16.msra.mxu0 %v456
    %475 = vmatprep.subr.bf16.mxu0 0
    %476 = vmatpush1.bf16.msra.mxu0 %v457
    %477 = vmatprep.subr.bf16.mxu0 0
    %478 = vmatpush1.bf16.msra.mxu0 %v458
    %479 = vmatprep.subr.bf16.mxu0 0
    %480 = vmatpush1.bf16.msra.mxu0 %v459
    %481 = vmatprep.subr.bf16.mxu0 0
    %482 = vmatpush1.bf16.msra.mxu0 %v460
    %483 = vmatprep.subr.bf16.mxu0 0
    %484 = vmatpush1.bf16.msra.mxu0 %v461
    %485 = vmatprep.subr.bf16.mxu0 0
    %486 = vmatpush1.bf16.msra.mxu0 %v462
    %487 = vmatprep.subr.bf16.mxu0 0
    %488 = vmatpush1.bf16.msra.mxu0 0
    %489 = vmatprep.subr.bf16.mxu0 0
    %490 = vmatpush1.bf16.msra.mxu0 0
    %491 = vmatprep.subr.bf16.mxu0 0
    %492 = vmatpush1.bf16.msra.mxu0 0
    %493 = vmatprep.subr.bf16.mxu0 0
    %494 = vmatpush1.bf16.msra.mxu0 0
    %495 = vmatprep.subr.bf16.mxu0 0
    %496 = vmatpush1.bf16.msra.mxu0 0
    %497 = vmatprep.subr.bf16.mxu0 0
    %498 = vmatpush1.bf16.msra.mxu0 0
    %499 = vmatprep.subr.bf16.mxu0 0
    %500 = vmatpush1.bf16.msra.mxu0 0
    %501 = vmatprep.subr.bf16.mxu0 0
    %502 = vmatpush1.bf16.msra.mxu0 0
    %503 = vmatprep.mubr.bf16.mxu0 0
    %504 = vmatmul.mubr.bf16.gmra.mrb[0].mxu0 %v422
    %v505 = vpop.f32.mrb[0].mxu0
    %v506 = vadd.f32 0.0, %v505
    %v507 = vpop.f32.mrb[0].mxu0
    %v508 = vpop.f32.mrb[0].mxu0
    %v509 = vpop.f32.mrb[0].mxu0
    %510 = vdwg.mxu0
    %v527 = vunpack.c.l.b16 %v88
    %v528 = vunpack.c.l.b16 %v89
    %v529 = vunpack.c.l.b16 %v90
    %v530 = vunpack.c.l.b16 %v91
    %v531 = vunpack.c.l.b16 %v92
    %v532 = vunpack.c.l.b16 %v93
    %v533 = vunpack.c.l.b16 %v94
    %v534 = vunpack.c.l.b16 %v95
    %v535 = vunpack.c.l.b16 %v96
    %v536 = vunpack.c.l.b16 %v97
    %v537 = vunpack.c.l.b16 %v98
    %v538 = vunpack.c.l.b16 %v99
    %v539 = vunpack.c.l.b16 %v100
    %v540 = vunpack.c.l.b16 %v101
    %v541 = vunpack.c.l.b16 %v102
    %v542 = vunpack.c.l.b16 %v103
    %v543 = vpack.c.b16 %v528, %v527
    %v544 = vpack.c.b16 %v530, %v529
    %v545 = vpack.c.b16 %v532, %v531
    %v546 = vpack.c.b16 %v534, %v533
    %v547 = vpack.c.b16 %v536, %v535
    %v548 = vpack.c.b16 %v538, %v537
    %v549 = vpack.c.b16 %v540, %v539
    %v550 = vpack.c.b16 %v542, %v541
    %559 = vmatprep.subr.bf16.mxu0 0
    %560 = vmatpush1.bf16.msra.mxu0 %v543
    %561 = vmatprep.subr.bf16.mxu0 0
    %562 = vmatpush1.bf16.msra.mxu0 %v544
    %563 = vmatprep.subr.bf16.mxu0 0
    %564 = vmatpush1.bf16.msra.mxu0 %v545
    %565 = vmatprep.subr.bf16.mxu0 0
    %566 = vmatpush1.bf16.msra.mxu0 %v546
    %567 = vmatprep.subr.bf16.mxu0 0
    %568 = vmatpush1.bf16.msra.mxu0 %v547
    %569 = vmatprep.subr.bf16.mxu0 0
    %570 = vmatpush1.bf16.msra.mxu0 %v548
    %571 = vmatprep.subr.bf16.mxu0 0
    %572 = vmatpush1.bf16.msra.mxu0 %v549
    %573 = vmatprep.subr.bf16.mxu0 0
    %574 = vmatpush1.bf16.msra.mxu0 %v550
    %575 = vmatprep.subr.bf16.mxu0 0
    %576 = vmatpush1.bf16.msra.mxu0 0
    %577 = vmatprep.subr.bf16.mxu0 0
    %578 = vmatpush1.bf16.msra.mxu0 0
    %579 = vmatprep.subr.bf16.mxu0 0
    %580 = vmatpush1.bf16.msra.mxu0 0
    %581 = vmatprep.subr.bf16.mxu0 0
    %582 = vmatpush1.bf16.msra.mxu0 0
    %583 = vmatprep.subr.bf16.mxu0 0
    %584 = vmatpush1.bf16.msra.mxu0 0
    %585 = vmatprep.subr.bf16.mxu0 0
    %586 = vmatpush1.bf16.msra.mxu0 0
    %587 = vmatprep.subr.bf16.mxu0 0
    %588 = vmatpush1.bf16.msra.mxu0 0
    %589 = vmatprep.subr.bf16.mxu0 0
    %590 = vmatpush1.bf16.msra.mxu0 0
    %591 = vmatprep.mubr.bf16.mxu0 0
    %592 = vmatmul.mubr.bf16.gmra.mrb[0].mxu0 %v421
    %v593 = vpop.f32.mrb[0].mxu0
    %v594 = vadd.f32 %v506, %v593
    %v595 = vpop.f32.mrb[0].mxu0
    %v596 = vpop.f32.mrb[0].mxu0
    %v597 = vpop.f32.mrb[0].mxu0
    %598 = vdwg.mxu0
    %v599 = vld [vmem:[%s4 + $0x2] sm:$0x1]
    %v600 = vlaneseq
    %v601 = vshrl.u32 %v600, 7
    %v602 = vsub.s32 0, %v601
    %v603 = vrot.slane %v599, %v602
    %v604 = vadd.f32 %v594, %v603
    %vm605 = vcmp.gt.f32.partialorder %v604, 0.0
    %v606 = vmul.f32 %v604, 0.01
    %v607 = vsel %vm605, %v604, %v606
    %v608 = vpack.c.bf16 %v607, %v607
    %v609 = vld [vmem:[%s4 + $0x3] sm:$0x1]
    %v610 = vlaneseq
    %v611 = vshrl.u32 %v610, 7
    %v612 = vsub.s32 0, %v611
    %v613 = vrot.slane %v609, %v612
    %v630 = vunpack.c.l.b16 %v120
    %v631 = vunpack.c.l.b16 %v121
    %v632 = vunpack.c.l.b16 %v122
    %v633 = vunpack.c.l.b16 %v123
    %v634 = vunpack.c.l.b16 %v124
    %v635 = vunpack.c.l.b16 %v125
    %v636 = vunpack.c.l.b16 %v126
    %v637 = vunpack.c.l.b16 %v127
    %v638 = vunpack.c.l.b16 %v128
    %v639 = vunpack.c.l.b16 %v129
    %v640 = vunpack.c.l.b16 %v130
    %v641 = vunpack.c.l.b16 %v131
    %v642 = vunpack.c.l.b16 %v132
    %v643 = vunpack.c.l.b16 %v133
    %v644 = vunpack.c.l.b16 %v134
    %v645 = vunpack.c.l.b16 %v135
    %v646 = vpack.c.b16 %v631, %v630
    %v647 = vpack.c.b16 %v633, %v632
    %v648 = vpack.c.b16 %v635, %v634
    %v649 = vpack.c.b16 %v637, %v636
    %v650 = vpack.c.b16 %v639, %v638
    %v651 = vpack.c.b16 %v641, %v640
    %v652 = vpack.c.b16 %v643, %v642
    %v653 = vpack.c.b16 %v645, %v644
    %662 = vmatprep.subr.bf16.mxu0 0
    %663 = vmatpush1.bf16.msra.mxu0 %v646
    %664 = vmatprep.subr.bf16.mxu0 0
    %665 = vmatpush1.bf16.msra.mxu0 %v647
    %666 = vmatprep.subr.bf16.mxu0 0
    %667 = vmatpush1.bf16.msra.mxu0 %v648
    %668 = vmatprep.subr.bf16.mxu0 0
    %669 = vmatpush1.bf16.msra.mxu0 %v649
    %670 = vmatprep.subr.bf16.mxu0 0
    %671 = vmatpush1.bf16.msra.mxu0 %v650
    %672 = vmatprep.subr.bf16.mxu0 0
    %673 = vmatpush1.bf16.msra.mxu0 %v651
    %674 = vmatprep.subr.bf16.mxu0 0
    %675 = vmatpush1.bf16.msra.mxu0 %v652
    %676 = vmatprep.subr.bf16.mxu0 0
    %677 = vmatpush1.bf16.msra.mxu0 %v653
    %678 = vmatprep.subr.bf16.mxu0 0
    %679 = vmatpush1.bf16.msra.mxu0 0
    %680 = vmatprep.subr.bf16.mxu0 0
    %681 = vmatpush1.bf16.msra.mxu0 0
    %682 = vmatprep.subr.bf16.mxu0 0
    %683 = vmatpush1.bf16.msra.mxu0 0
    %684 = vmatprep.subr.bf16.mxu0 0
    %685 = vmatpush1.bf16.msra.mxu0 0
    %686 = vmatprep.subr.bf16.mxu0 0
    %687 = vmatpush1.bf16.msra.mxu0 0
    %688 = vmatprep.subr.bf16.mxu0 0
    %689 = vmatpush1.bf16.msra.mxu0 0
    %690 = vmatprep.subr.bf16.mxu0 0
    %691 = vmatpush1.bf16.msra.mxu0 0
    %692 = vmatprep.subr.bf16.mxu0 0
    %693 = vmatpush1.bf16.msra.mxu0 0
    %694 = vmatprep.mubr.bf16.mxu0 0
    %695 = vmatmul.mubr.bf16.gmra.mrb[0].mxu0 %v608
    %v696 = vpop.f32.mrb[0].mxu0
    %v697 = vadd.f32 %v613, %v696
    %v698 = vpop.f32.mrb[0].mxu0
    %v699 = vpop.f32.mrb[0].mxu0
    %v700 = vpop.f32.mrb[0].mxu0
    %701 = vdwg.mxu0
    %vm702 = vcmp.gt.f32.partialorder %v697, 0.0
    %v703 = vmul.f32 %v697, 0.01
    %v704 = vsel %vm702, %v697, %v703
    %v705 = vpack.c.bf16 %v704, %v704
    %v706 = vld [vmem:[%s4 + $0x4] sm:$0x1]
    %v707 = vlaneseq
    %v708 = vshrl.u32 %v707, 7
    %v709 = vsub.s32 0, %v708
    %v710 = vrot.slane %v706, %v709
    %v727 = vunpack.c.l.b16 %v136
    %v728 = vunpack.c.l.b16 %v137
    %v729 = vunpack.c.l.b16 %v138
    %v730 = vunpack.c.l.b16 %v139
    %v731 = vunpack.c.l.b16 %v140
    %v732 = vunpack.c.l.b16 %v141
    %v733 = vunpack.c.l.b16 %v142
    %v734 = vunpack.c.l.b16 %v143
    %v735 = vunpack.c.l.b16 %v144
    %v736 = vunpack.c.l.b16 %v145
    %v737 = vunpack.c.l.b16 %v146
    %v738 = vunpack.c.l.b16 %v147
    %v739 = vunpack.c.l.b16 %v148
    %v740 = vunpack.c.l.b16 %v149
    %v741 = vunpack.c.l.b16 %v150
    %v742 = vunpack.c.l.b16 %v151
    %v743 = vpack.c.b16 %v728, %v727
    %v744 = vpack.c.b16 %v730, %v729
    %v745 = vpack.c.b16 %v732, %v731
    %v746 = vpack.c.b16 %v734, %v733
    %v747 = vpack.c.b16 %v736, %v735
    %v748 = vpack.c.b16 %v738, %v737
    %v749 = vpack.c.b16 %v740, %v739
    %v750 = vpack.c.b16 %v742, %v741
    %759 = vmatprep.subr.bf16.mxu0 0
    %760 = vmatpush1.bf16.msra.mxu0 %v743
    %761 = vmatprep.subr.bf16.mxu0 0
    %762 = vmatpush1.bf16.msra.mxu0 %v744
    %763 = vmatprep.subr.bf16.mxu0 0
    %764 = vmatpush1.bf16.msra.mxu0 %v745
    %765 = vmatprep.subr.bf16.mxu0 0
    %766 = vmatpush1.bf16.msra.mxu0 %v746
    %767 = vmatprep.subr.bf16.mxu0 0
    %768 = vmatpush1.bf16.msra.mxu0 %v747
    %769 = vmatprep.subr.bf16.mxu0 0
    %770 = vmatpush1.bf16.msra.mxu0 %v748
    %771 = vmatprep.subr.bf16.mxu0 0
    %772 = vmatpush1.bf16.msra.mxu0 %v749
    %773 = vmatprep.subr.bf16.mxu0 0
    %774 = vmatpush1.bf16.msra.mxu0 %v750
    %775 = vmatprep.subr.bf16.mxu0 0
    %776 = vmatpush1.bf16.msra.mxu0 0
    %777 = vmatprep.subr.bf16.mxu0 0
    %778 = vmatpush1.bf16.msra.mxu0 0
    %779 = vmatprep.subr.bf16.mxu0 0
    %780 = vmatpush1.bf16.msra.mxu0 0
    %781 = vmatprep.subr.bf16.mxu0 0
    %782 = vmatpush1.bf16.msra.mxu0 0
    %783 = vmatprep.subr.bf16.mxu0 0
    %784 = vmatpush1.bf16.msra.mxu0 0
    %785 = vmatprep.subr.bf16.mxu0 0
    %786 = vmatpush1.bf16.msra.mxu0 0
    %787 = vmatprep.subr.bf16.mxu0 0
    %788 = vmatpush1.bf16.msra.mxu0 0
    %789 = vmatprep.subr.bf16.mxu0 0
    %790 = vmatpush1.bf16.msra.mxu0 0
    %791 = vmatprep.mubr.bf16.mxu0 0
    %792 = vmatmul.mubr.bf16.gmra.mrb[0].mxu0 %v705
    %v793 = vpop.f32.mrb[0].mxu0
    %v794 = vadd.f32 %v710, %v793
    %v795 = vpop.f32.mrb[0].mxu0
    %v796 = vpop.f32.mrb[0].mxu0
    %v797 = vpop.f32.mrb[0].mxu0
    %798 = vdwg.mxu0
    %vm799 = vcmp.gt.f32.partialorder %v794, 0.0
    %v800 = vmul.f32 %v794, 0.01
    %v801 = vsel %vm799, %v794, %v800
    %v802 = vmul.f32 %v801, %v801
    %803 = vadd.xlane.f32.xlu0 %v802
    %v804 = vpop.xlane.xlu0 %803
    %v805 = vmax.f32 %v804, 1e-12
    %v806 = vrsqrt.pop %v805
    %v807 = vmul.f32 %v801, %v806
    %808 = vst [vmem:[#allocation8] sm:$0xff] %v807
    %v809 = vld [vmem:[%s2] sm:$0xf]
    %v810 = vld [vmem:[%s4 + $0x5] sm:$0x1]
    %v811 = vlaneseq
    %v812 = vshrl.u32 %v811, 7
    %v813 = vsub.s32 0, %v812
    %v814 = vrot.slane %v810, %v813
    %v819 = vunpack.c.l.b16 %v152
    %v820 = vunpack.c.l.b16 %v153
    %v821 = vunpack.c.l.b16 %v154
    %v822 = vunpack.c.l.b16 %v155
    %v823 = vpack.c.b16 %v820, %v819
    %v824 = vpack.c.b16 %v822, %v821
    %vm827 = vcmask 261120
    %v829 = vsel %vm827, %v809, 0
    %831 = vmatprep.subr.bf16.mxu0 0
    %832 = vmatpush1.bf16.msra.mxu0 %v823
    %833 = vmatprep.subr.bf16.mxu0 0
    %834 = vmatpush1.bf16.msra.mxu0 %v824
    %835 = vmatprep.subr.bf16.mxu0 0
    %836 = vmatpush1.bf16.msra.mxu0 0
    %837 = vmatprep.subr.bf16.mxu0 0
    %838 = vmatpush1.bf16.msra.mxu0 0
    %839 = vmatprep.subr.bf16.mxu0 0
    %840 = vmatpush1.bf16.msra.mxu0 0
    %841 = vmatprep.subr.bf16.mxu0 0
    %842 = vmatpush1.bf16.msra.mxu0 0
    %843 = vmatprep.subr.bf16.mxu0 0
    %844 = vmatpush1.bf16.msra.mxu0 0
    %845 = vmatprep.subr.bf16.mxu0 0
    %846 = vmatpush1.bf16.msra.mxu0 0
    %847 = vmatprep.subr.bf16.mxu0 0
    %848 = vmatpush1.bf16.msra.mxu0 0
    %849 = vmatprep.subr.bf16.mxu0 0
    %850 = vmatpush1.bf16.msra.mxu0 0
    %851 = vmatprep.subr.bf16.mxu0 0
    %852 = vmatpush1.bf16.msra.mxu0 0
    %853 = vmatprep.subr.bf16.mxu0 0
    %854 = vmatpush1.bf16.msra.mxu0 0
    %855 = vmatprep.subr.bf16.mxu0 0
    %856 = vmatpush1.bf16.msra.mxu0 0
    %857 = vmatprep.subr.bf16.mxu0 0
    %858 = vmatpush1.bf16.msra.mxu0 0
    %859 = vmatprep.subr.bf16.mxu0 0
    %860 = vmatpush1.bf16.msra.mxu0 0
    %861 = vmatprep.subr.bf16.mxu0 0
    %862 = vmatpush1.bf16.msra.mxu0 0
    %863 = vmatprep.mubr.bf16.mxu0 0
    %864 = vmatmul.mubr.bf16.gmra.mrb[0].mxu0 %v829
    %v865 = vpop.f32.mrb[0].mxu0
    %v866 = vadd.f32 %v814, %v865
    %v867 = vpop.f32.mrb[0].mxu0
    %v868 = vpop.f32.mrb[0].mxu0
    %v869 = vpop.f32.mrb[0].mxu0
    %870 = vdwg.mxu0
    %v871 = vmul.f32 %v866, %v866
    %872 = vadd.xlane.f32.xlu0 %v871
    %v873 = vpop.xlane.xlu0 %872
    %v874 = vmax.f32 %v873, 1e-12
    %v875 = vrsqrt.pop %v874
    %v876 = vmul.f32 %v866, %v875
    %877 = vst [vmem:[#allocation9] sm:$0xff] %v876
    // Predicated region
    $region34: #{tpu_custom_call.1} parent=1 // pred_check
      _
    $region35: #{tpu_custom_call.1} parent=1 // pred_check_branch
      %879 = sbr.rel (0) target = $region37
    $region36: #{tpu_custom_call.1} parent=1 // pred_region
      %s881 = ssub.s32 128, 128
      %882 = vsyncadd [#allocation4], %s881
      %s884 = sshll.u32 [#allocation8], 4
      %s885 = int_to_ptr.vmem [resolvable:$true] %s884
      %887 = dma.vmem_to_hbm [thread:$0]  %s885, 128, %s5, [#allocation4]
    $region37: #{tpu_custom_call.1} parent=1 // pred_fallthru
      _
    // Predicated region
    $region38: #{tpu_custom_call.1} parent=1 // pred_check
      _
    $region39: #{tpu_custom_call.1} parent=1 // pred_check_branch
      %889 = sbr.rel (0) target = $region41
    $region40: #{tpu_custom_call.1} parent=1 // pred_region
      %s891 = ssub.s32 128, 128
      %892 = vsyncadd [#allocation10], %s891
      %s894 = sshll.u32 [#allocation9], 4
      %s895 = int_to_ptr.vmem [resolvable:$true] %s894
      %897 = dma.vmem_to_hbm [thread:$0]  %s895, 128, %s6, [#allocation10]
    $region41: #{tpu_custom_call.1} parent=1 // pred_fallthru
      _
    // Predicated region
    $region42: #{tpu_custom_call.1} parent=1 // pred_check
      _
    $region43: #{tpu_custom_call.1} parent=1 // pred_check_branch
      %899 = sbr.rel (0) target = $region45
    $region44: #{tpu_custom_call.1} parent=1 // pred_region
      %900 = dma.done [#allocation4], 128
    $region45: #{tpu_custom_call.1} parent=1 // pred_fallthru
      _
    // Predicated region
    $region46: #{tpu_custom_call.1} parent=1 // pred_check
      _
    $region47: #{tpu_custom_call.1} parent=1 // pred_check_branch
      %902 = sbr.rel (0) target = $region49
    $region48: #{tpu_custom_call.1} parent=1 // pred_region
      %903 = dma.done [#allocation10], 128
    $region49: #{tpu_custom_call.1} parent=1 // pred_fallthru
      _
    %904 = vsyncpa [#allocation3], 1
    %905 = vsyncpa [#allocation6], 1
    %906 = vsyncpa [#allocation4], 1
    %907 = vsyncpa [#allocation10], 1

</llo_original>
